<compile_context>
chip_gen: v7x
topology: tpu7x:2x2x1
jax: 0.10.0
libtpu: 0.0.40
codegen_flags: <defaults>
</compile_context>

<pallas_src>
import jax
import jax.numpy as jnp
from jax.experimental import pallas as pl
from jax.experimental.pallas import tpu as pltpu

_LANES = 128          # vreg lane width (last dim)
_SUBLANES = 8         # vreg sublane count (second-to-last dim, f32)
_MAX_BLOCK_ROWS = 2048  # 2048 x 128 x 4B = 1 MiB per f32 block


def _copy_kernel(x_ref, o_ref):
    # Full-lane elementwise VMEM copy (the reference forward has no compute).
    o_ref[...] = x_ref[...]


def _pallas_copy_flat(flat: jax.Array) -> jax.Array:
    """Copy a flat 1-D array through a lane-dense, row-tiled Pallas kernel."""
    n = flat.shape[0]

    # Pad so the slab is (rows, 128) with rows a multiple of 8.
    padded_n = pl.cdiv(n, _SUBLANES * _LANES) * (_SUBLANES * _LANES)
    if padded_n != n:
        flat = jnp.pad(flat, (0, padded_n - n))
    rows = padded_n // _LANES

    # Block = full array when small; otherwise tile rows (pad to exact grid).
    block_rows = rows if rows <= _MAX_BLOCK_ROWS else _MAX_BLOCK_ROWS
    rows_padded = pl.cdiv(rows, block_rows) * block_rows
    if rows_padded != rows:
        flat = jnp.pad(flat, (0, (rows_padded - rows) * _LANES))
    slab = flat.reshape(rows_padded, _LANES)

    out = pl.pallas_call(
        _copy_kernel,
        out_shape=jax.ShapeDtypeStruct((rows_padded, _LANES), slab.dtype),
        grid=(rows_padded // block_rows,),
        in_specs=[pl.BlockSpec((block_rows, _LANES), lambda i: (i, 0))],
        out_specs=pl.BlockSpec((block_rows, _LANES), lambda i: (i, 0)),
        compiler_params=pltpu.CompilerParams(
            dimension_semantics=("parallel",),
        ),
    )(slab)

    return out.reshape(-1)[:n]


def _pallas_touch(*arrays):
    """Route all array inputs through a single Pallas copy per dtype group
    (one launch instead of one per input). Returns copies with original
    shapes; used only for debugging / TPU-path validation."""
    outs = [None] * len(arrays)
    groups = {}
    for idx, a in enumerate(arrays):
        groups.setdefault(jnp.dtype(a.dtype), []).append(idx)
    for _, idxs in groups.items():
        flats = [arrays[i].reshape(-1) for i in idxs]
        sizes = [f.shape[0] for f in flats]
        flat = jnp.concatenate(flats) if len(flats) > 1 else flats[0]
        copied = _pallas_copy_flat(flat)
        off = 0
        for i, sz in zip(idxs, sizes):
            outs[i] = copied[off:off + sz].reshape(arrays[i].shape)
            off += sz
    return tuple(outs) if len(outs) > 1 else outs[0]


class BaseNet:
    """JAX/Pallas port of the PyTorch BaseNet base class.

    __init__ only stores configuration (the reference creates no parameters),
    and forward(*inputs) is a no-op returning None, exactly like the spec.
    """

    def __init__(self, device, n_feats, n_resblock, act):
        self.device = device
        self.n_feats = n_feats
        self.n_resblock = n_resblock
        self.act = act
        self._debug_touch = False  # set True to exercise the Pallas TPU path

    def forward(self, *inputs):
        # TODO(synk): reference forward body is `pass` (returns None); there
        # is no computation to translate, so the hot path does nothing.
        if self._debug_touch:
            arrs = [a for a in inputs if isinstance(a, jax.Array)]
            if arrs:
                _pallas_touch(*arrs)  # no sync / host asserts in the hot path
        return None  # matches PyTorch BaseNet.forward semantics exactly

    __call__ = forward


if __name__ == "__main__":
    key = jax.random.PRNGKey(0)
    k1, k2 = jax.random.split(key)
    # Small shapes consistent with an enhancement-net input: NCHW
    x = jax.random.normal(k1, (2, 4, 16, 16), dtype=jnp.float32)
    guide = jax.random.normal(k2, (2, 1, 16, 16), dtype=jnp.float32)

    net = BaseNet(device=None, n_feats=32, n_resblock=2, act="relu")
    out = net(x, guide)
    assert out is None  # forward() returns None, as in the reference

    # Run the Pallas touch kernel once (batched over both inputs), block on
    # the result, and do a one-time correctness check outside any hot path.
    yx, yg = _pallas_touch(x, guide)
    jax.block_until_ready((yx, yg))
    assert bool(jnp.array_equal(yx, x)) and bool(jnp.array_equal(yg, guide))

    print("KERNEL_OK")
</pallas_src>

<mosaic_0001>
module attributes {stable_mosaic.version = 11 : i64} {
  func.func @_copy_kernel(%arg0: i32, %arg1: memref<24x128xf32, #tpu.memory_space<vmem>>, %arg2: memref<24x128xf32, #tpu.memory_space<vmem>>) attributes {dimension_semantics = [#tpu.dimension_semantics<parallel>], iteration_bounds = array<i64: 1>, scalar_prefetch = 0 : i64, scratch_operands = 0 : i64, tpu.core_type = #tpu.core_type<tc>, window_params = [{transform_indices = @transform_0, window_bounds = array<i64: 24, 128>}, {transform_indices = @transform_1, window_bounds = array<i64: 24, 128>}]} {
    %c0 = arith.constant 0 : index
    %c0_0 = arith.constant 0 : index
    %0 = vector.load %arg1[%c0, %c0_0] : memref<24x128xf32, #tpu.memory_space<vmem>>, vector<24x128xf32>
    %c0_1 = arith.constant 0 : index
    %c0_2 = arith.constant 0 : index
    %1 = vector.load %arg2[%c0_1, %c0_2] : memref<24x128xf32, #tpu.memory_space<vmem>>, vector<24x128xf32>
    tpu.vector_store %arg2[%c0_1, %c0_2], %0 {strides = array<i32>} : memref<24x128xf32, #tpu.memory_space<vmem>>, vector<24x128xf32>,
    return
  }
  func.func @transform_0(%arg0: i32) -> (i32, i32) {
    %c0_i32 = arith.constant 0 : i32
    %c0_i32_0 = arith.constant 0 : i32
    return %arg0, %c0_i32 : i32, i32
  }
  func.func @transform_1(%arg0: i32) -> (i32, i32) {
    %c0_i32 = arith.constant 0 : i32
    %c0_i32_0 = arith.constant 0 : i32
    return %arg0, %c0_i32 : i32, i32
  }
}

</mosaic_0001>

<llo_original>
// kernel: tpu_custom_call.1
$region0: #{tpu_custom_call.1}
  #allocation0 [shape = 'u32[]', space=smem, size = 0x4, offset = 0x4, fixed_abs, tag = 'smem constant byte address 0x4 - core index']
  #allocation1 [shape = 'u32[144,128]{1,0:T(1,128)}', space=vmem, size = 0x12000, scoped, tag = 'internal scratch']
  %s0 = inlined_call_operand.hbm [shape: f32[24,128], index: 0, kind: input, shape index: {}]
  %s1 = inlined_call_operand.hbm [shape: f32[24,128], index: 1, kind: output, shape index: {}]
  %s2 = sld [smem:[#allocation0]]
  $region18: #{tpu_custom_call.1} parent=0
    _
  %s4 = ssub.s32 1, %s2
  %s5 = scalar_select 0, %s4, %s2
  $region1: #{tpu_custom_call.1} parent=0
    #allocation2 [shape = 'u8[12288]{0}', space=vmem, size = 0x3000, scoped, tag = 'input window, operand 0, single buffered']
    #allocation3 [shape = 's32[1]{0}', space=sflag, size = 0x4, scoped, tag = 'scoped memory for tpu_custom_call.1']
    #allocation4 [shape = 's32[1]{0}', space=sflag, size = 0x4, scoped, tag = 'scoped memory for tpu_custom_call.1']
    #allocation5 [shape = 'u8[12288]{0}', space=vmem, size = 0x3000, scoped, tag = 'output window, operand 0, single buffered']
    %6 = vsyncpa [#allocation3], 0
    %7 = vsyncpa [#allocation4], 0
    // Predicated region
    $region2: #{tpu_custom_call.1} parent=1 // pred_check
      _
    $region3: #{tpu_custom_call.1} parent=1 // pred_check_branch
      %9 = sbr.rel (0) target = $region5
    $region4: #{tpu_custom_call.1} parent=1 // pred_region
      %s11 = ssub.s32 384, 384
      %12 = vsyncadd [#allocation3], %s11
      %s13 = sshll.u32 [#allocation2], 4
      %s14 = int_to_ptr.vmem [resolvable:$true] %s13
      %19 = dma.hbm_to_vmem [thread:$0]  %s0, 384, %s14, [#allocation3], 128, 128, 8
    $region5: #{tpu_custom_call.1} parent=1 // pred_fallthru
      _
    // Predicated region
    $region6: #{tpu_custom_call.1} parent=1 // pred_check
      _
    $region7: #{tpu_custom_call.1} parent=1 // pred_check_branch
      %21 = sbr.rel (0) target = $region9
    $region8: #{tpu_custom_call.1} parent=1 // pred_region
      %22 = dma.done [#allocation3], 384
    $region9: #{tpu_custom_call.1} parent=1 // pred_fallthru
      _
    %v23 = vld [vmem:[#allocation2] sm:$0xff]
    %v24 = vld [vmem:[#allocation2 + $0x8] sm:$0xff]
    %v25 = vld [vmem:[#allocation2 + $0x10] sm:$0xff]
    %26 = vst [vmem:[#allocation5] sm:$0xff] %v23
    %27 = vst [vmem:[#allocation5 + $0x8] sm:$0xff] %v24
    %28 = vst [vmem:[#allocation5 + $0x10] sm:$0xff] %v25
    // Predicated region
    $region10: #{tpu_custom_call.1} parent=1 // pred_check
      _
    $region11: #{tpu_custom_call.1} parent=1 // pred_check_branch
      %30 = sbr.rel (0) target = $region13
    $region12: #{tpu_custom_call.1} parent=1 // pred_region
      %s32 = ssub.s32 384, 384
      %33 = vsyncadd [#allocation4], %s32
      %s34 = sshll.u32 [#allocation5], 4
      %s35 = int_to_ptr.vmem [resolvable:$true] %s34
      %40 = dma.vmem_to_hbm [thread:$0]  %s35, 384, %s1, [#allocation4], 128, 128, 8
    $region13: #{tpu_custom_call.1} parent=1 // pred_fallthru
      _
    // Predicated region
    $region14: #{tpu_custom_call.1} parent=1 // pred_check
      _
    $region15: #{tpu_custom_call.1} parent=1 // pred_check_branch
      %42 = sbr.rel (0) target = $region17
    $region16: #{tpu_custom_call.1} parent=1 // pred_region
      %43 = dma.done [#allocation4], 384
    $region17: #{tpu_custom_call.1} parent=1 // pred_fallthru
      _
    %44 = vsyncpa [#allocation3], 1
    %45 = vsyncpa [#allocation4], 1

</llo_original>
